<compile_context>
chip_gen: v7x
topology: tpu7x:2x2x1
jax: 0.10.0
libtpu: 0.0.40
codegen_flags: <defaults>
</compile_context>

<pallas_src>
import jax
import jax.numpy as jnp
from jax.experimental import pallas as pl
from jax.experimental.pallas import tpu as pltpu

_LANE = 128
_SUBLANE = 8


def _make_mlp_kernel(d_h1, d_h2, col_w1, col_b1, col_b2, col_w3, col_b3):
    """Build the kernel. Activations are lane-major: (features, batch_tile)."""

    def kernel(x_ref, p_ref, o_ref):
        x = x_ref[...]                                   # (1, TN)

        # Static slices of the packed parameter slab (no extra DMAs).
        w2t    = p_ref[0:d_h2, 0:d_h1]                   # (d_h2, d_h1) == W2^T
        w1_col = p_ref[0:d_h1, col_w1:col_w1 + 1]        # (d_h1, 1)
        b1_col = p_ref[0:d_h1, col_b1:col_b1 + 1]        # (d_h1, 1)
        b2_col = p_ref[0:d_h2, col_b2:col_b2 + 1]        # (d_h2, 1)
        w3_col = p_ref[0:d_h2, col_w3:col_w3 + 1]        # (d_h2, 1)
        b3     = p_ref[0:1,    col_b3:col_b3 + 1]        # (1, 1)

        # Layer 1 (d_in == 1): K=1 "matmul" -> VPU broadcast multiply + relu.
        h1 = jnp.maximum(w1_col * x + b1_col, 0.0)       # (d_h1, TN)

        # Layer 2: the only real matmul -> MXU with f32 accumulation.
        h2 = jnp.dot(w2t, h1, preferred_element_type=jnp.float32) + b2_col
        h2 = jnp.maximum(h2, 0.0)                        # (d_h2, TN)

        # Layer 3 (d_out == 1): N=1 "matmul" -> VPU multiply + sublane reduce.
        y = jnp.sum(h2 * w3_col, axis=0, keepdims=True) + b3   # (1, TN)

        o_ref[...] = y.astype(o_ref.dtype)               # lane-dense store

    return kernel


def pack_params(params):
    """Pack the 6 parameter arrays into one lane-aligned f32 slab.

    Slab layout (rows x 128 lanes):
      cols [0, d_h1)         : W2^T            (d_h2 rows)
      col  d_h1              : W1 as a column  (d_h1 rows)   [d_in == 1]
      col  d_h1 + 1          : b1 as a column  (d_h1 rows)
      col  d_h1 + 2          : b2 as a column  (d_h2 rows)
      col  d_h1 + 3          : W3 as a column  (d_h2 rows)   [d_out == 1]
      col  d_h1 + 4, row 0   : b3 scalar
    """
    w1, b1, w2, b2, w3, b3 = params
    d_in, d_h1 = w1.shape
    d_h1_, d_h2 = w2.shape
    d_h2_, d_out = w3.shape
    assert d_in == 1 and d_out == 1 and d_h1 == d_h1_ and d_h2 == d_h2_

    rows = -(-max(d_h1, d_h2) // _SUBLANE) * _SUBLANE
    cols = -(-(d_h1 + 5) // _LANE) * _LANE

    col_w1 = d_h1
    col_b1 = d_h1 + 1
    col_b2 = d_h1 + 2
    col_w3 = d_h1 + 3
    col_b3 = d_h1 + 4

    slab = jnp.zeros((rows, cols), jnp.float32)
    slab = slab.at[:d_h2, :d_h1].set(w2.T.astype(jnp.float32))
    slab = slab.at[:d_h1, col_w1].set(w1[0, :].astype(jnp.float32))
    slab = slab.at[:d_h1, col_b1].set(b1.astype(jnp.float32))
    slab = slab.at[:d_h2, col_b2].set(b2.astype(jnp.float32))
    slab = slab.at[:d_h2, col_w3].set(w3[:, 0].astype(jnp.float32))
    slab = slab.at[0, col_b3].set(b3[0].astype(jnp.float32))

    meta = dict(d_h1=d_h1, d_h2=d_h2, col_w1=col_w1, col_b1=col_b1,
                col_b2=col_b2, col_w3=col_w3, col_b3=col_b3)
    return slab, meta


def net_forward(x, params, *, tile_n=512):
    """Forward pass. x: (N, 1) float32 (PyTorch layout). Returns (N, 1)."""
    n, d_in = x.shape
    assert d_in == 1
    slab, meta = pack_params(params)

    # (N, 1) -> (1, N) is a pure reshape (no data movement); it makes every
    # in-kernel tensor lane-dense and the output store unmasked.
    x_lane = x.reshape(1, n)

    # Batch tiling along the lane axis: large tiles amortize per-step overhead
    # and the weight slab stays VMEM-resident (index_map always returns (0,0)).
    # TODO(synk): re-derive tile_n per chip generation (v7x has 64 MiB VMEM).
    if n >= tile_n and n % tile_n == 0:
        tn = tile_n
    else:
        tn = n                         # single tile (e.g. the 100-sample toy)
    grid = (n // tn,)

    kernel = _make_mlp_kernel(**meta)

    y_lane = pl.pallas_call(
        kernel,
        out_shape=jax.ShapeDtypeStruct((1, n), x.dtype),
        grid=grid,
        in_specs=[
            pl.BlockSpec((1, tn), lambda i: (0, i)),        # batch tile
            pl.BlockSpec(slab.shape, lambda i: (0, 0)),     # resident params
        ],
        out_specs=pl.BlockSpec((1, tn), lambda i: (0, i)),
        compiler_params=pltpu.CompilerParams(
            dimension_semantics=("parallel",),              # megacore on v7x
        ),
    )(x_lane, slab)

    return y_lane.reshape(n, 1)


def init_params(key, d_in, d_h1, d_h2, d_out):
    """Deterministic init mimicking nn.Linear's U(-1/sqrt(fan_in), 1/sqrt(fan_in))."""
    ks = jax.random.split(key, 6)

    def lin(kw, kb, fan_in, fan_out):
        bound = 1.0 / jnp.sqrt(jnp.float32(fan_in))
        w = jax.random.uniform(kw, (fan_in, fan_out), jnp.float32, -bound, bound)
        b = jax.random.uniform(kb, (fan_out,), jnp.float32, -bound, bound)
        return w, b

    w1, b1 = lin(ks[0], ks[1], d_in, d_h1)
    w2, b2 = lin(ks[2], ks[3], d_h1, d_h2)
    w3, b3 = lin(ks[4], ks[5], d_h2, d_out)
    return (w1, b1, w2, b2, w3, b3)


def reference_forward(x, params):
    w1, b1, w2, b2, w3, b3 = params
    h1 = jax.nn.relu(x @ w1 + b1)
    h2 = jax.nn.relu(h1 @ w2 + b2)
    return h2 @ w3 + b3


if __name__ == "__main__":
    key = jax.random.PRNGKey(0)

    # Mirrors the script: x = linspace(-1, 1, 100).view(-1, 1)  -> (100, 1)
    d_in, d_h1, d_h2, d_out = 1, 32, 32, 1
    x = jnp.linspace(-1.0, 1.0, 100, dtype=jnp.float32).reshape(-1, 1)

    params = init_params(key, d_in, d_h1, d_h2, d_out)

    y = net_forward(x, params)
    y = jax.block_until_ready(y)

    y_ref = reference_forward(x, params)
    assert y.shape == (100, 1)
    assert jnp.allclose(y, y_ref, atol=1e-5, rtol=1e-5)

    print("KERNEL_OK")
</pallas_src>

<mosaic_0001>
module attributes {stable_mosaic.version = 11 : i64} {
  func.func @kernel(%arg0: i32, %arg1: memref<1x100xf32, #tpu.memory_space<vmem>>, %arg2: memref<32x128xf32, #tpu.memory_space<vmem>>, %arg3: memref<1x100xf32, #tpu.memory_space<vmem>>) attributes {dimension_semantics = [#tpu.dimension_semantics<parallel>], iteration_bounds = array<i64: 1>, scalar_prefetch = 0 : i64, scratch_operands = 0 : i64, tpu.core_type = #tpu.core_type<tc>, window_params = [{transform_indices = @transform_0, window_bounds = array<i64: 1, 100>}, {pipeline_mode = #tpu.pipeline_mode<synchronous>, transform_indices = @transform_1, window_bounds = array<i64: 32, 128>}, {transform_indices = @transform_2, window_bounds = array<i64: 1, 100>}]} {
    %c0 = arith.constant 0 : index
    %c0_0 = arith.constant 0 : index
    %0 = vector.load %arg1[%c0, %c0_0] : memref<1x100xf32, #tpu.memory_space<vmem>>, vector<1x100xf32>
    %c0_1 = arith.constant 0 : index
    %c0_2 = arith.constant 0 : index
    %1 = vector.load %arg2[%c0_1, %c0_2] : memref<32x128xf32, #tpu.memory_space<vmem>>, vector<32x32xf32>
    %c0_3 = arith.constant 0 : index
    %c32 = arith.constant 32 : index
    %2 = vector.load %arg2[%c0_3, %c32] : memref<32x128xf32, #tpu.memory_space<vmem>>, vector<32x1xf32>
    %c0_4 = arith.constant 0 : index
    %c33 = arith.constant 33 : index
    %3 = vector.load %arg2[%c0_4, %c33] : memref<32x128xf32, #tpu.memory_space<vmem>>, vector<32x1xf32>
    %c0_5 = arith.constant 0 : index
    %c34 = arith.constant 34 : index
    %4 = vector.load %arg2[%c0_5, %c34] : memref<32x128xf32, #tpu.memory_space<vmem>>, vector<32x1xf32>
    %c0_6 = arith.constant 0 : index
    %c35 = arith.constant 35 : index
    %5 = vector.load %arg2[%c0_6, %c35] : memref<32x128xf32, #tpu.memory_space<vmem>>, vector<32x1xf32>
    %c0_7 = arith.constant 0 : index
    %c36 = arith.constant 36 : index
    %6 = vector.load %arg2[%c0_7, %c36] : memref<32x128xf32, #tpu.memory_space<vmem>>, vector<1x1xf32>
    %7 = vector.broadcast %2 : vector<32x1xf32> to vector<32x100xf32>
    %8 = vector.broadcast %0 : vector<1x100xf32> to vector<32x100xf32>
    %9 = arith.mulf %7, %8 : vector<32x100xf32>
    %10 = vector.broadcast %3 : vector<32x1xf32> to vector<32x100xf32>
    %11 = arith.addf %9, %10 : vector<32x100xf32>
    %cst = arith.constant 0.000000e+00 : f32
    %12 = vector.broadcast %cst : f32 to vector<32x100xf32>
    %13 = arith.maximumf %11, %12 : vector<32x100xf32>
    %cst_8 = arith.constant dense<0.000000e+00> : vector<32x100xf32>
    %14 = tpu.matmul %1, %13, %cst_8 {dimension_numbers = #tpu.dot_dimension_numbers<[1], [0], [0], [1], [0, 0, 1, 1], [], []>} : vector<32x32xf32>, vector<32x100xf32>, vector<32x100xf32> -> vector<32x100xf32>
    %15 = vector.broadcast %4 : vector<32x1xf32> to vector<32x100xf32>
    %16 = arith.addf %14, %15 : vector<32x100xf32>
    %cst_9 = arith.constant 0.000000e+00 : f32
    %17 = vector.broadcast %cst_9 : f32 to vector<32x100xf32>
    %18 = arith.maximumf %16, %17 : vector<32x100xf32>
    %19 = vector.broadcast %5 : vector<32x1xf32> to vector<32x100xf32>
    %20 = arith.mulf %18, %19 : vector<32x100xf32>
    %cst_10 = arith.constant dense<0.000000e+00> : vector<100xf32>
    %21 = vector.multi_reduction <add>, %20, %cst_10 [0] : vector<32x100xf32> to vector<100xf32>
    %22 = vector.shape_cast %21 : vector<100xf32> to vector<1x100xf32>
    %23 = vector.broadcast %6 : vector<1x1xf32> to vector<1x100xf32>
    %24 = arith.addf %22, %23 : vector<1x100xf32>
    %c0_11 = arith.constant 0 : index
    %c0_12 = arith.constant 0 : index
    %25 = vector.load %arg3[%c0_11, %c0_12] : memref<1x100xf32, #tpu.memory_space<vmem>>, vector<1x100xf32>
    tpu.vector_store %arg3[%c0_11, %c0_12], %24 {strides = array<i32>} : memref<1x100xf32, #tpu.memory_space<vmem>>, vector<1x100xf32>,
    return
  }
  func.func @transform_0(%arg0: i32) -> (i32, i32) {
    %c0_i32 = arith.constant 0 : i32
    %c0_i32_0 = arith.constant 0 : i32
    return %c0_i32, %arg0 : i32, i32
  }
  func.func @transform_1(%arg0: i32) -> (i32, i32) {
    %c0_i32 = arith.constant 0 : i32
    %c0_i32_0 = arith.constant 0 : i32
    %c0_i32_1 = arith.constant 0 : i32
    return %c0_i32, %c0_i32_0 : i32, i32
  }
  func.func @transform_2(%arg0: i32) -> (i32, i32) {
    %c0_i32 = arith.constant 0 : i32
    %c0_i32_0 = arith.constant 0 : i32
    return %c0_i32, %arg0 : i32, i32
  }
}

</mosaic_0001>

<llo_original>
// kernel: tpu_custom_call.1
$region0: #{tpu_custom_call.1}
  #allocation0 [shape = 'u32[]', space=smem, size = 0x4, offset = 0x4, fixed_abs, tag = 'smem constant byte address 0x4 - core index']
  #allocation1 [shape = 'u32[144,128]{1,0:T(1,128)}', space=vmem, size = 0x12000, scoped, tag = 'internal scratch']
  %s0 = inlined_call_operand.hbm [shape: f32[1,100], index: 0, kind: input, shape index: {}]
  %s1 = inlined_call_operand.hbm [shape: f32[32,128], index: 1, kind: input, shape index: {}]
  %s2 = inlined_call_operand.hbm [shape: f32[1,100], index: 2, kind: output, shape index: {}]
  %s3 = sld [smem:[#allocation0]]
  $region26: #{tpu_custom_call.1} parent=0
    _
  %s5 = ssub.s32 1, %s3
  %s6 = scalar_select 0, %s5, %s3
  $region1: #{tpu_custom_call.1} parent=0
    #allocation2 [shape = 'u8[512]{0}', space=vmem, size = 0x400, scoped, tag = 'input window, operand 0, single buffered']
    #allocation3 [shape = 's32[1]{0}', space=sflag, size = 0x4, scoped, tag = 'scoped memory for tpu_custom_call.1']
    #allocation4 [shape = 's32[1]{0}', space=sflag, size = 0x4, scoped, tag = 'scoped memory for tpu_custom_call.1']
    #allocation5 [shape = 'u8[16384]{0}', space=vmem, size = 0x4000, scoped, tag = 'input window, operand 1, single buffered']
    #allocation6 [shape = 's32[1]{0}', space=sflag, size = 0x4, scoped, tag = 'scoped memory for tpu_custom_call.1']
    #allocation7 [shape = 'u8[512]{0}', space=vmem, size = 0x400, scoped, tag = 'output window, operand 0, single buffered']
    %7 = vsyncpa [#allocation3], 0
    %8 = vsyncpa [#allocation6], 0
    %9 = vsyncpa [#allocation4], 0
    // Predicated region
    $region2: #{tpu_custom_call.1} parent=1 // pred_check
      _
    $region3: #{tpu_custom_call.1} parent=1 // pred_check_branch
      %11 = sbr.rel (0) target = $region5
    $region4: #{tpu_custom_call.1} parent=1 // pred_region
      %s13 = ssub.s32 16, 16
      %14 = vsyncadd [#allocation3], %s13
      %s16 = sshll.u32 [#allocation2], 4
      %s17 = int_to_ptr.vmem [resolvable:$true] %s16
      %19 = dma.hbm_to_vmem [thread:$0]  %s0, 16, %s17, [#allocation3]
    $region5: #{tpu_custom_call.1} parent=1 // pred_fallthru
      _
    // Predicated region
    $region6: #{tpu_custom_call.1} parent=1 // pred_check
      _
    $region7: #{tpu_custom_call.1} parent=1 // pred_check_branch
      %21 = sbr.rel (0) target = $region9
    $region8: #{tpu_custom_call.1} parent=1 // pred_region
      %s23 = ssub.s32 512, 512
      %24 = vsyncadd [#allocation6], %s23
      %s25 = sshll.u32 [#allocation5], 4
      %s26 = int_to_ptr.vmem [resolvable:$true] %s25
      %31 = dma.hbm_to_vmem [thread:$0]  %s1, 512, %s26, [#allocation6], 128, 128, 8
    $region9: #{tpu_custom_call.1} parent=1 // pred_fallthru
      _
    // Predicated region
    $region10: #{tpu_custom_call.1} parent=1 // pred_check
      _
    $region11: #{tpu_custom_call.1} parent=1 // pred_check_branch
      %33 = sbr.rel (0) target = $region13
    $region12: #{tpu_custom_call.1} parent=1 // pred_region
      %34 = dma.done [#allocation3], 16
    $region13: #{tpu_custom_call.1} parent=1 // pred_fallthru
      _
    // Predicated region
    $region14: #{tpu_custom_call.1} parent=1 // pred_check
      _
    $region15: #{tpu_custom_call.1} parent=1 // pred_check_branch
      %36 = sbr.rel (0) target = $region17
    $region16: #{tpu_custom_call.1} parent=1 // pred_region
      %37 = dma.done [#allocation6], 512
    $region17: #{tpu_custom_call.1} parent=1 // pred_fallthru
      _
    %v38 = vld [vmem:[#allocation2] sm:$0x1]
    %v39 = vld [vmem:[#allocation5] sm:$0xff]
    %v40 = vld [vmem:[#allocation5 + $0x8] sm:$0xff]
    %v41 = vld [vmem:[#allocation5 + $0x10] sm:$0xff]
    %v42 = vld [vmem:[#allocation5 + $0x18] sm:$0xff]
    %v43 = vld [vmem:[#allocation5] sm:$0x1]
    %45 = vset.pattern.permute.xlu0 32
    %46 = vperm.xlu0 %45, %v39
    %v47 = vpop.permute.xlu0 %46
    %50 = vset.pattern.permute.xlu0 32
    %51 = vperm.xlu0 %50, %v40
    %v52 = vpop.permute.xlu0 %51
    %55 = vset.pattern.permute.xlu0 32
    %56 = vperm.xlu0 %55, %v41
    %v57 = vpop.permute.xlu0 %56
    %60 = vset.pattern.permute.xlu0 32
    %61 = vperm.xlu0 %60, %v42
    %v62 = vpop.permute.xlu0 %61
    %v65 = vlaneseq
    %v66 = vshrl.u32 %v65, 7
    %v67 = vsub.s32 0, %v66
    %v68 = vrot.slane %v38, %v67
    %v70 = vmul.f32 %v47, %v68
    %v71 = vmul.f32 %v52, %v68
    %v72 = vmul.f32 %v57, %v68
    %v73 = vmul.f32 %v62, %v68
    %74 = vset.pattern.permute.xlu0 33
    %75 = vperm.xlu0 %74, %v39
    %v76 = vpop.permute.xlu0 %75
    %78 = vset.pattern.permute.xlu0 33
    %79 = vperm.xlu0 %78, %v40
    %v80 = vpop.permute.xlu0 %79
    %82 = vset.pattern.permute.xlu0 33
    %83 = vperm.xlu0 %82, %v41
    %v84 = vpop.permute.xlu0 %83
    %86 = vset.pattern.permute.xlu0 33
    %87 = vperm.xlu0 %86, %v42
    %v88 = vpop.permute.xlu0 %87
    %v90 = vadd.f32 %v70, %v76
    %v91 = vadd.f32 %v71, %v80
    %v92 = vadd.f32 %v72, %v84
    %v93 = vadd.f32 %v73, %v88
    %v94 = vmax.f32 %v90, 0.0
    %v95 = vmax.f32 %v91, 0.0
    %v96 = vmax.f32 %v92, 0.0
    %v97 = vmax.f32 %v93, 0.0
    %98 = vset.pattern.permute.xlu0 34
    %99 = vperm.xlu0 %98, %v39
    %v100 = vpop.permute.xlu0 %99
    %102 = vset.pattern.permute.xlu0 34
    %103 = vperm.xlu0 %102, %v40
    %v104 = vpop.permute.xlu0 %103
    %106 = vset.pattern.permute.xlu0 34
    %107 = vperm.xlu0 %106, %v41
    %v108 = vpop.permute.xlu0 %107
    %110 = vset.pattern.permute.xlu0 34
    %111 = vperm.xlu0 %110, %v42
    %v112 = vpop.permute.xlu0 %111
    %vm114 = vcmask 261120
    %v115 = vsel %vm114, %v39, 0
    %v117 = vsel %vm114, %v40, 0
    %v119 = vsel %vm114, %v41, 0
    %v121 = vsel %vm114, %v42, 0
    %123 = vmatprep.subr.mxu0 0.0
    %124 = vmatpush1.msra.mxu0 %v94
    %125 = vmatprep.subr.mxu0 0.0
    %126 = vmatpush1.msra.mxu0 %v95
    %127 = vmatprep.subr.mxu0 0.0
    %128 = vmatpush1.msra.mxu0 %v96
    %129 = vmatprep.subr.mxu0 0.0
    %130 = vmatpush1.msra.mxu0 %v97
    %131 = vmatprep.subr.mxu0 0.0
    %132 = vmatpush1.msra.mxu0 0.0
    %133 = vmatprep.subr.mxu0 0.0
    %134 = vmatpush1.msra.mxu0 0.0
    %135 = vmatprep.subr.mxu0 0.0
    %136 = vmatpush1.msra.mxu0 0.0
    %137 = vmatprep.subr.mxu0 0.0
    %138 = vmatpush1.msra.mxu0 0.0
    %139 = vmatprep.subr.mxu0 0.0
    %140 = vmatpush1.msra.mxu0 0.0
    %141 = vmatprep.subr.mxu0 0.0
    %142 = vmatpush1.msra.mxu0 0.0
    %143 = vmatprep.subr.mxu0 0.0
    %144 = vmatpush1.msra.mxu0 0.0
    %145 = vmatprep.subr.mxu0 0.0
    %146 = vmatpush1.msra.mxu0 0.0
    %147 = vmatprep.subr.mxu0 0.0
    %148 = vmatpush1.msra.mxu0 0.0
    %149 = vmatprep.subr.mxu0 0.0
    %150 = vmatpush1.msra.mxu0 0.0
    %151 = vmatprep.subr.mxu0 0.0
    %152 = vmatpush1.msra.mxu0 0.0
    %153 = vmatprep.subr.mxu0 0.0
    %154 = vmatpush1.msra.mxu0 0.0
    %155 = vmatprep.subr.mxu0 0.0
    %156 = vmatpush1.msra.mxu0 0.0
    %157 = vmatprep.subr.mxu0 0.0
    %158 = vmatpush1.msra.mxu0 0.0
    %159 = vmatprep.subr.mxu0 0.0
    %160 = vmatpush1.msra.mxu0 0.0
    %161 = vmatprep.subr.mxu0 0.0
    %162 = vmatpush1.msra.mxu0 0.0
    %163 = vmatprep.subr.mxu0 0.0
    %164 = vmatpush1.msra.mxu0 0.0
    %165 = vmatprep.subr.mxu0 0.0
    %166 = vmatpush1.msra.mxu0 0.0
    %167 = vmatprep.subr.mxu0 0.0
    %168 = vmatpush1.msra.mxu0 0.0
    %169 = vmatprep.subr.mxu0 0.0
    %170 = vmatpush1.msra.mxu0 0.0
    %171 = vmatprep.subr.mxu0 0.0
    %172 = vmatpush1.msra.mxu0 0.0
    %173 = vmatprep.subr.mxu0 0.0
    %174 = vmatpush1.msra.mxu0 0.0
    %175 = vmatprep.subr.mxu0 0.0
    %176 = vmatpush1.msra.mxu0 0.0
    %177 = vmatprep.subr.mxu0 0.0
    %178 = vmatpush1.msra.mxu0 0.0
    %179 = vmatprep.subr.mxu0 0.0
    %180 = vmatpush1.msra.mxu0 0.0
    %181 = vmatprep.subr.mxu0 0.0
    %182 = vmatpush1.msra.mxu0 0.0
    %183 = vmatprep.subr.mxu0 0.0
    %184 = vmatpush1.msra.mxu0 0.0
    %185 = vmatprep.subr.mxu0 0.0
    %186 = vmatpush1.msra.mxu0 0.0
    %187 = vmatprep.mubr.f32.mxu0 0.0
    %188 = vmatmul.mubr.f32.gmra.mrb[0].mxu0 %v115
    %v189 = vpop.f32.mrb[0].mxu0
    %v190 = vadd.f32 %v100, %v189
    %v191 = vpop.f32.mrb[0].mxu0
    %192 = vmatprep.mubr.f32.mxu0 0.0
    %193 = vmatmul.mubr.f32.gmra.mrb[0].mxu0 %v117
    %v194 = vpop.f32.mrb[0].mxu0
    %v195 = vadd.f32 %v104, %v194
    %v196 = vpop.f32.mrb[0].mxu0
    %197 = vmatprep.mubr.f32.mxu0 0.0
    %198 = vmatmul.mubr.f32.gmra.mrb[0].mxu0 %v119
    %v199 = vpop.f32.mrb[0].mxu0
    %v200 = vadd.f32 %v108, %v199
    %v201 = vpop.f32.mrb[0].mxu0
    %202 = vmatprep.mubr.f32.mxu0 0.0
    %203 = vmatmul.mubr.f32.gmra.mrb[0].mxu0 %v121
    %v204 = vpop.f32.mrb[0].mxu0
    %v205 = vadd.f32 %v112, %v204
    %v206 = vpop.f32.mrb[0].mxu0
    %207 = vdwg.mxu0
    %v208 = vmax.f32 %v190, 0.0
    %v209 = vmax.f32 %v195, 0.0
    %v210 = vmax.f32 %v200, 0.0
    %v211 = vmax.f32 %v205, 0.0
    %212 = vset.pattern.permute.xlu0 35
    %213 = vperm.xlu0 %212, %v39
    %v214 = vpop.permute.xlu0 %213
    %216 = vset.pattern.permute.xlu0 35
    %217 = vperm.xlu0 %216, %v40
    %v218 = vpop.permute.xlu0 %217
    %220 = vset.pattern.permute.xlu0 35
    %221 = vperm.xlu0 %220, %v41
    %v222 = vpop.permute.xlu0 %221
    %224 = vset.pattern.permute.xlu0 35
    %225 = vperm.xlu0 %224, %v42
    %v226 = vpop.permute.xlu0 %225
    %v228 = vmul.f32 %v208, %v214
    %v229 = vmul.f32 %v209, %v218
    %v230 = vmul.f32 %v210, %v222
    %v231 = vmul.f32 %v211, %v226
    %vm232 = vcmask 818176
    %v233 = vsel %vm232, %v228, 0.0
    %v234 = vsel %vm232, %v229, 0.0
    %v235 = vadd.f32 %v233, %v234
    %v236 = vsel %vm232, %v230, 0.0
    %v237 = vadd.f32 %v235, %v236
    %v238 = vsel %vm232, %v231, 0.0
    %v239 = vadd.f32 %v237, %v238
    %v240 = vrot.slane %v239, 4
    %v241 = vadd.f32 %v239, %v240
    %v242 = vrot.slane %v241, 2
    %v243 = vadd.f32 %v241, %v242
    %v244 = vrot.slane %v243, 1
    %v245 = vadd.f32 %v243, %v244
    %247 = vset.pattern.permute.xlu0 36
    %248 = vperm.xlu0 %247, %v43
    %v249 = vpop.permute.xlu0 %248
    %v251 = vadd.f32 %v245, %v249
    %vm252 = vcmask 811008
    %253 = vst.msk [vmem:[#allocation7] sm:$0x1] %vm252, %v251
    // Predicated region
    $region18: #{tpu_custom_call.1} parent=1 // pred_check
      _
    $region19: #{tpu_custom_call.1} parent=1 // pred_check_branch
      %255 = sbr.rel (0) target = $region21
    $region20: #{tpu_custom_call.1} parent=1 // pred_region
      %s257 = ssub.s32 16, 16
      %258 = vsyncadd [#allocation4], %s257
      %s260 = sshll.u32 [#allocation7], 4
      %s261 = int_to_ptr.vmem [resolvable:$true] %s260
      %263 = dma.vmem_to_hbm [thread:$0]  %s261, 16, %s2, [#allocation4]
    $region21: #{tpu_custom_call.1} parent=1 // pred_fallthru
      _
    // Predicated region
    $region22: #{tpu_custom_call.1} parent=1 // pred_check
      _
    $region23: #{tpu_custom_call.1} parent=1 // pred_check_branch
      %265 = sbr.rel (0) target = $region25
    $region24: #{tpu_custom_call.1} parent=1 // pred_region
      %266 = dma.done [#allocation4], 16
    $region25: #{tpu_custom_call.1} parent=1 // pred_fallthru
      _
    %267 = vsyncpa [#allocation3], 1
    %268 = vsyncpa [#allocation6], 1
    %269 = vsyncpa [#allocation4], 1

</llo_original>
